<compile_context>
chip_gen: v7x
topology: tpu7x:2x2x1
jax: 0.10.0
libtpu: 0.0.40
codegen_flags: <defaults>
</compile_context>

<pallas_src>
import numpy as np
import jax
import jax.numpy as jnp
from jax.experimental import pallas as pl
from jax.experimental.pallas import tpu as pltpu


# ---------------- architecture constants (ConvNet: Conv2d(1,4,k=7,s=3) on 28x28) ----------------
IN_C, IMG_H, IMG_W = 1, 28, 28
OUT_C, KSIZE, STRIDE = 4, 7, 3
OUT_H = (IMG_H - KSIZE) // STRIDE + 1      # 8
OUT_W = (IMG_W - KSIZE) // STRIDE + 1      # 8
FEAT = OUT_C * OUT_H * OUT_W               # 256  (matches PyTorch view(-1, 256))
PIX = IN_C * IMG_H * IMG_W                 # 784
HIDDEN_PAD = 128                           # fc1 hidden padded to a full lane width
OUT_PAD = 128                              # fc2 output padded to a full lane width


def _round_up(n, m):
    return ((n + m - 1) // m) * m


# ---------------- fused Pallas kernel ----------------

def _convnet_kernel(x_ref, wc_ref, bc_ref, w1_ref, b1_ref, w2_ref, b2_ref, o_ref):
    # stage 1: conv-as-matmul (structured bf16 weight encodes conv + channel-major flatten),
    #          f32 accumulation / bias / square
    f = jnp.dot(x_ref[...], wc_ref[...], preferred_element_type=jnp.float32)    # [TB, 256] f32
    f = f + bc_ref[...]
    f = f * f
    # stage 2: fc1 (hidden padded to 128 lanes) + square; bf16 operands, f32 accumulate
    h = jnp.dot(f.astype(jnp.bfloat16), w1_ref[...],
                preferred_element_type=jnp.float32)                             # [TB, 128] f32
    h = h + b1_ref[...]
    h = h * h
    # stage 3: fc2 (output padded to 128 lanes -> unmasked, lane-dense stores)
    o = jnp.dot(h.astype(jnp.bfloat16), w2_ref[...],
                preferred_element_type=jnp.float32)                             # [TB, 128] f32
    o_ref[...] = o + b2_ref[...]


# ---------------- structured conv weight (static scatter indices, built once at import) --------

def _build_struct_indices():
    rows, cols, ci, khi, kwi = [], [], [], [], []
    for c in range(OUT_C):
        for oh in range(OUT_H):
            for ow in range(OUT_W):
                for kh in range(KSIZE):
                    for kw in range(KSIZE):
                        rows.append((oh * STRIDE + kh) * IMG_W + (ow * STRIDE + kw))
                        cols.append(c * OUT_H * OUT_W + oh * OUT_W + ow)   # channel-major
                        ci.append(c); khi.append(kh); kwi.append(kw)
    return (np.asarray(rows), np.asarray(cols),
            np.asarray(ci), np.asarray(khi), np.asarray(kwi))


_ROWS, _COLS, _CI, _KHI, _KWI = _build_struct_indices()

# weight-prep cache: params-object id -> device-resident prepped weights
_WEIGHT_CACHE = {}


def _prep_weights(params):
    """Build (once, on host with numpy) the Toeplitz conv weight and padded fc weights."""
    key = id(params)
    cached = _WEIGHT_CACHE.get(key)
    if cached is not None:
        return cached

    conv_w = np.asarray(jax.device_get(params["conv1_w"]), np.float32)     # [4, 1, 7, 7]
    conv_b = np.asarray(jax.device_get(params["conv1_b"]), np.float32)     # [4]
    fc1_w = np.asarray(jax.device_get(params["fc1_w"]), np.float32)        # [hidden, 256]
    fc1_b = np.asarray(jax.device_get(params["fc1_b"]), np.float32)        # [hidden]
    fc2_w = np.asarray(jax.device_get(params["fc2_w"]), np.float32)        # [ncls, hidden]
    fc2_b = np.asarray(jax.device_get(params["fc2_b"]), np.float32)        # [ncls]

    hidden = fc1_w.shape[0]
    ncls = fc2_w.shape[0]

    wc = np.zeros((PIX, FEAT), np.float32)
    wc[_ROWS, _COLS] = conv_w[_CI, 0, _KHI, _KWI]                          # [784, 256]
    bc = np.repeat(conv_b, OUT_H * OUT_W).reshape(1, FEAT)                 # [1, 256] channel-major

    w1 = np.zeros((FEAT, HIDDEN_PAD), np.float32)
    w1[:, :hidden] = fc1_w.T                                               # [256, 128]
    b1 = np.zeros((1, HIDDEN_PAD), np.float32)
    b1[0, :hidden] = fc1_b

    w2 = np.zeros((HIDDEN_PAD, OUT_PAD), np.float32)
    w2[:hidden, :ncls] = fc2_w.T                                           # [128, 128]
    b2 = np.zeros((1, OUT_PAD), np.float32)
    b2[0, :ncls] = fc2_b

    prepped = (
        jnp.asarray(wc, jnp.bfloat16),   # MXU operands in bf16
        jnp.asarray(bc, jnp.float32),    # biases stay f32
        jnp.asarray(w1, jnp.bfloat16),
        jnp.asarray(b1, jnp.float32),
        jnp.asarray(w2, jnp.bfloat16),
        jnp.asarray(b2, jnp.float32),
        ncls,
    )
    _WEIGHT_CACHE[key] = prepped
    return prepped


# ---------------- wrapper ----------------

def _choose_tile_b(B):
    # >= 2 grid steps whenever B allows it (v7x has 2 TensorCores), cap at 1024 rows.
    half = -(-B // 2)                                  # cdiv(B, 2)
    return min(1024, max(8, _round_up(half, 8)))


def convnet_forward(x, params):
    """x: [B, 1, 28, 28] float32 (NCHW, PyTorch layout). Returns [B, num_classes] float32."""
    B = x.shape[0]
    assert x.shape[1:] == (IN_C, IMG_H, IMG_W), x.shape

    wc, bc, w1, b1, w2, b2, ncls = _prep_weights(params)

    # flatten image to [B, 784] (row index h*28 + w matches the structured-weight rows),
    # bf16 halves the dominant HBM stream into the kernel
    x_flat = x.reshape(B, PIX).astype(jnp.bfloat16)

    tile_b = _choose_tile_b(B)
    grid_b = pl.cdiv(B, tile_b)
    bp = grid_b * tile_b            # output rows (full blocks -> unmasked stores); input NOT padded

    flops = 2 * bp * (PIX * FEAT + FEAT * HIDDEN_PAD + HIDDEN_PAD * OUT_PAD)
    bytes_accessed = (B * PIX * 2 + bp * OUT_PAD * 4
                      + (PIX * FEAT + FEAT * HIDDEN_PAD + HIDDEN_PAD * OUT_PAD) * 2
                      + (FEAT + HIDDEN_PAD + OUT_PAD) * 4)

    out = pl.pallas_call(
        _convnet_kernel,
        out_shape=jax.ShapeDtypeStruct((bp, OUT_PAD), jnp.float32),
        grid=(grid_b,),
        in_specs=[
            pl.BlockSpec((tile_b, PIX), lambda i: (i, 0)),          # input rows (tiled; boundary
                                                                    #  block partial for ragged B)
            pl.BlockSpec((PIX, FEAT), lambda i: (0, 0)),            # structured conv weight (bf16)
            pl.BlockSpec((1, FEAT), lambda i: (0, 0)),              # conv bias (f32)
            pl.BlockSpec((FEAT, HIDDEN_PAD), lambda i: (0, 0)),     # fc1 weight (bf16, padded)
            pl.BlockSpec((1, HIDDEN_PAD), lambda i: (0, 0)),        # fc1 bias (f32, padded)
            pl.BlockSpec((HIDDEN_PAD, OUT_PAD), lambda i: (0, 0)),  # fc2 weight (bf16, padded)
            pl.BlockSpec((1, OUT_PAD), lambda i: (0, 0)),           # fc2 bias (f32, padded)
        ],
        out_specs=pl.BlockSpec((tile_b, OUT_PAD), lambda i: (i, 0)),
        compiler_params=pltpu.CompilerParams(
            dimension_semantics=("parallel",)),                     # megacore over batch tiles
        cost_estimate=pl.CostEstimate(
            flops=flops, transcendentals=0, bytes_accessed=bytes_accessed),
    )(x_flat, wc, bc, w1, b1, w2, b2)                               # [bp, 128]

    return out[:B, :ncls]                                           # [B, num_classes]


# ---------------- deterministic parameter init (matches PyTorch module shapes) ----------------

def init_params(key, hidden=64, output=10):
    ks = jax.random.split(key, 6)

    def u(k, shape, fan_in):
        bound = 1.0 / jnp.sqrt(float(fan_in))
        return jax.random.uniform(k, shape, jnp.float32, -bound, bound)

    return {
        "conv1_w": u(ks[0], (4, 1, 7, 7), 1 * 7 * 7),   # Conv2d(1, 4, 7, stride=3)
        "conv1_b": u(ks[1], (4,), 1 * 7 * 7),
        "fc1_w":  u(ks[2], (hidden, 256), 256),          # Linear(256, hidden)
        "fc1_b":  u(ks[3], (hidden,), 256),
        "fc2_w":  u(ks[4], (output, hidden), hidden),    # Linear(hidden, output)
        "fc2_b":  u(ks[5], (output,), hidden),
    }


# ---------------- pure-JAX f32 reference (for sanity check) ----------------

def convnet_reference(x, params):
    y = jax.lax.conv_general_dilated(
        x, params["conv1_w"], window_strides=(3, 3), padding="VALID",
        dimension_numbers=("NCHW", "OIHW", "NCHW"))
    y = y + params["conv1_b"].reshape(1, -1, 1, 1)
    y = y * y
    y = y.reshape(x.shape[0], 256)
    y = y @ params["fc1_w"].T + params["fc1_b"]
    y = y * y
    y = y @ params["fc2_w"].T + params["fc2_b"]
    return y


if __name__ == "__main__":
    key = jax.random.PRNGKey(0)
    pkey, xkey, xkey2 = jax.random.split(key, 3)
    params = init_params(pkey, hidden=64, output=10)

    # Architecture fixes spatial size to 28x28 (flatten to 256); small batch=2.
    x = jax.random.normal(xkey, (2, 1, 28, 28), jnp.float32)

    out = convnet_forward(x, params)
    jax.block_until_ready(out)
    assert out.shape == (2, 10), out.shape

    ref = convnet_reference(x, params)
    # bf16 MXU operands + two squarings -> loosened tolerance vs the exact f32 reference
    assert jnp.allclose(out, ref, rtol=5e-2, atol=5e-2), float(jnp.max(jnp.abs(out - ref)))

    # second call: exercises the weight-prep cache, a multi-step grid and the ragged
    # (partial) boundary block without any host-side padding of x
    x2 = jax.random.normal(xkey2, (11, 1, 28, 28), jnp.float32)
    out2 = convnet_forward(x2, params)
    jax.block_until_ready(out2)
    assert out2.shape == (11, 10), out2.shape
    ref2 = convnet_reference(x2, params)
    assert jnp.allclose(out2, ref2, rtol=5e-2, atol=5e-2), float(jnp.max(jnp.abs(out2 - ref2)))

    print("KERNEL_OK")
</pallas_src>

<mosaic_0001>
module attributes {stable_mosaic.version = 11 : i64} {
  func.func @_convnet_kernel(%arg0: i32, %arg1: memref<8x784xbf16, #tpu.memory_space<vmem>>, %arg2: memref<784x256xbf16, #tpu.memory_space<vmem>>, %arg3: memref<1x256xf32, #tpu.memory_space<vmem>>, %arg4: memref<256x128xbf16, #tpu.memory_space<vmem>>, %arg5: memref<1x128xf32, #tpu.memory_space<vmem>>, %arg6: memref<128x128xbf16, #tpu.memory_space<vmem>>, %arg7: memref<1x128xf32, #tpu.memory_space<vmem>>, %arg8: memref<8x128xf32, #tpu.memory_space<vmem>>) attributes {dimension_semantics = [#tpu.dimension_semantics<parallel>], iteration_bounds = array<i64: 1>, scalar_prefetch = 0 : i64, scratch_operands = 0 : i64, tpu.core_type = #tpu.core_type<tc>, window_params = [{transform_indices = @transform_0, window_bounds = array<i64: 8, 784>}, {pipeline_mode = #tpu.pipeline_mode<synchronous>, transform_indices = @transform_1, window_bounds = array<i64: 784, 256>}, {pipeline_mode = #tpu.pipeline_mode<synchronous>, transform_indices = @transform_2, window_bounds = array<i64: 1, 256>}, {pipeline_mode = #tpu.pipeline_mode<synchronous>, transform_indices = @transform_3, window_bounds = array<i64: 256, 128>}, {pipeline_mode = #tpu.pipeline_mode<synchronous>, transform_indices = @transform_4, window_bounds = array<i64: 1, 128>}, {pipeline_mode = #tpu.pipeline_mode<synchronous>, transform_indices = @transform_5, window_bounds = array<i64: 128, 128>}, {pipeline_mode = #tpu.pipeline_mode<synchronous>, transform_indices = @transform_6, window_bounds = array<i64: 1, 128>}, {transform_indices = @transform_7, window_bounds = array<i64: 8, 128>}]} {
    %c0 = arith.constant 0 : index
    %c0_0 = arith.constant 0 : index
    %0 = vector.load %arg1[%c0, %c0_0] : memref<8x784xbf16, #tpu.memory_space<vmem>>, vector<8x784xbf16>
    %c0_1 = arith.constant 0 : index
    %c0_2 = arith.constant 0 : index
    %1 = vector.load %arg2[%c0_1, %c0_2] : memref<784x256xbf16, #tpu.memory_space<vmem>>, vector<784x256xbf16>
    %cst = arith.constant dense<0.000000e+00> : vector<8x256xf32>
    %2 = tpu.matmul %0, %1, %cst {dimension_numbers = #tpu.dot_dimension_numbers<[1], [0], [0], [1], [0, 0, 1, 1], [], []>} : vector<8x784xbf16>, vector<784x256xbf16>, vector<8x256xf32> -> vector<8x256xf32>
    %c0_3 = arith.constant 0 : index
    %c0_4 = arith.constant 0 : index
    %3 = vector.load %arg3[%c0_3, %c0_4] : memref<1x256xf32, #tpu.memory_space<vmem>>, vector<1x256xf32>
    %4 = vector.broadcast %3 : vector<1x256xf32> to vector<8x256xf32>
    %5 = arith.addf %2, %4 : vector<8x256xf32>
    %6 = arith.mulf %5, %5 : vector<8x256xf32>
    %7 = arith.truncf %6 : vector<8x256xf32> to vector<8x256xbf16>
    %c0_5 = arith.constant 0 : index
    %c0_6 = arith.constant 0 : index
    %8 = vector.load %arg4[%c0_5, %c0_6] : memref<256x128xbf16, #tpu.memory_space<vmem>>, vector<256x128xbf16>
    %cst_7 = arith.constant dense<0.000000e+00> : vector<8x128xf32>
    %9 = tpu.matmul %7, %8, %cst_7 {dimension_numbers = #tpu.dot_dimension_numbers<[1], [0], [0], [1], [0, 0, 1, 1], [], []>} : vector<8x256xbf16>, vector<256x128xbf16>, vector<8x128xf32> -> vector<8x128xf32>
    %c0_8 = arith.constant 0 : index
    %c0_9 = arith.constant 0 : index
    %10 = vector.load %arg5[%c0_8, %c0_9] : memref<1x128xf32, #tpu.memory_space<vmem>>, vector<1x128xf32>
    %11 = vector.broadcast %10 : vector<1x128xf32> to vector<8x128xf32>
    %12 = arith.addf %9, %11 : vector<8x128xf32>
    %13 = arith.mulf %12, %12 : vector<8x128xf32>
    %14 = arith.truncf %13 : vector<8x128xf32> to vector<8x128xbf16>
    %c0_10 = arith.constant 0 : index
    %c0_11 = arith.constant 0 : index
    %15 = vector.load %arg6[%c0_10, %c0_11] : memref<128x128xbf16, #tpu.memory_space<vmem>>, vector<128x128xbf16>
    %cst_12 = arith.constant dense<0.000000e+00> : vector<8x128xf32>
    %16 = tpu.matmul %14, %15, %cst_12 {dimension_numbers = #tpu.dot_dimension_numbers<[1], [0], [0], [1], [0, 0, 1, 1], [], []>} : vector<8x128xbf16>, vector<128x128xbf16>, vector<8x128xf32> -> vector<8x128xf32>
    %c0_13 = arith.constant 0 : index
    %c0_14 = arith.constant 0 : index
    %17 = vector.load %arg7[%c0_13, %c0_14] : memref<1x128xf32, #tpu.memory_space<vmem>>, vector<1x128xf32>
    %18 = vector.broadcast %17 : vector<1x128xf32> to vector<8x128xf32>
    %19 = arith.addf %16, %18 : vector<8x128xf32>
    %c0_15 = arith.constant 0 : index
    %c0_16 = arith.constant 0 : index
    %20 = vector.load %arg8[%c0_15, %c0_16] : memref<8x128xf32, #tpu.memory_space<vmem>>, vector<8x128xf32>
    tpu.vector_store %arg8[%c0_15, %c0_16], %19 {strides = array<i32>} : memref<8x128xf32, #tpu.memory_space<vmem>>, vector<8x128xf32>,
    return
  }
  func.func @transform_0(%arg0: i32) -> (i32, i32) {
    %c0_i32 = arith.constant 0 : i32
    %c0_i32_0 = arith.constant 0 : i32
    return %arg0, %c0_i32 : i32, i32
  }
  func.func @transform_1(%arg0: i32) -> (i32, i32) {
    %c0_i32 = arith.constant 0 : i32
    %c0_i32_0 = arith.constant 0 : i32
    %c0_i32_1 = arith.constant 0 : i32
    return %c0_i32, %c0_i32_0 : i32, i32
  }
  func.func @transform_2(%arg0: i32) -> (i32, i32) {
    %c0_i32 = arith.constant 0 : i32
    %c0_i32_0 = arith.constant 0 : i32
    %c0_i32_1 = arith.constant 0 : i32
    return %c0_i32, %c0_i32_0 : i32, i32
  }
  func.func @transform_3(%arg0: i32) -> (i32, i32) {
    %c0_i32 = arith.constant 0 : i32
    %c0_i32_0 = arith.constant 0 : i32
    %c0_i32_1 = arith.constant 0 : i32
    return %c0_i32, %c0_i32_0 : i32, i32
  }
  func.func @transform_4(%arg0: i32) -> (i32, i32) {
    %c0_i32 = arith.constant 0 : i32
    %c0_i32_0 = arith.constant 0 : i32
    %c0_i32_1 = arith.constant 0 : i32
    return %c0_i32, %c0_i32_0 : i32, i32
  }
  func.func @transform_5(%arg0: i32) -> (i32, i32) {
    %c0_i32 = arith.constant 0 : i32
    %c0_i32_0 = arith.constant 0 : i32
    %c0_i32_1 = arith.constant 0 : i32
    return %c0_i32, %c0_i32_0 : i32, i32
  }
  func.func @transform_6(%arg0: i32) -> (i32, i32) {
    %c0_i32 = arith.constant 0 : i32
    %c0_i32_0 = arith.constant 0 : i32
    %c0_i32_1 = arith.constant 0 : i32
    return %c0_i32, %c0_i32_0 : i32, i32
  }
  func.func @transform_7(%arg0: i32) -> (i32, i32) {
    %c0_i32 = arith.constant 0 : i32
    %c0_i32_0 = arith.constant 0 : i32
    return %arg0, %c0_i32 : i32, i32
  }
}

</mosaic_0001>

<llo_original>
// kernel: tpu_custom_call.1
$region0: #{tpu_custom_call.1}
  #allocation0 [shape = 'u32[]', space=smem, size = 0x4, offset = 0x4, fixed_abs, tag = 'smem constant byte address 0x4 - core index']
  #allocation1 [shape = 'u32[144,128]{1,0:T(1,128)}', space=vmem, size = 0x12000, scoped, tag = 'internal scratch']
  %s0 = inlined_call_operand.hbm [shape: bf16[2,784], index: 0, kind: input, shape index: {}]
  %s1 = inlined_call_operand.hbm [shape: bf16[784,256], index: 1, kind: input, shape index: {}]
  %s2 = inlined_call_operand.vmem [shape: f32[1,256], index: 2, kind: input, shape index: {}]
  %s3 = inlined_call_operand.hbm [shape: bf16[256,128], index: 3, kind: input, shape index: {}]
  %s4 = inlined_call_operand.vmem [shape: f32[1,128], index: 4, kind: input, shape index: {}]
  %s5 = inlined_call_operand.hbm [shape: bf16[128,128], index: 5, kind: input, shape index: {}]
  %s6 = inlined_call_operand.vmem [shape: f32[1,128], index: 6, kind: input, shape index: {}]
  %s7 = inlined_call_operand.hbm [shape: f32[8,128], index: 7, kind: output, shape index: {}]
  %s8 = sld [smem:[#allocation0]]
  $region54: #{tpu_custom_call.1} parent=0
    _
  %s10 = ssub.s32 1, %s8
  %s11 = scalar_select 0, %s10, %s8
  $region1: #{tpu_custom_call.1} parent=0
    #allocation2 [shape = 'u8[14336]{0}', space=vmem, size = 0x3800, scoped, tag = 'input window, operand 0, single buffered']
    #allocation3 [shape = 's32[1]{0}', space=sflag, size = 0x4, scoped, tag = 'scoped memory for tpu_custom_call.1']
    #allocation4 [shape = 's32[1]{0}', space=sflag, size = 0x4, scoped, tag = 'scoped memory for tpu_custom_call.1']
    #allocation5 [shape = 'u8[401408]{0}', space=vmem, size = 0x62000, scoped, tag = 'input window, operand 1, single buffered']
    #allocation6 [shape = 's32[1]{0}', space=sflag, size = 0x4, scoped, tag = 'scoped memory for tpu_custom_call.1']
    #allocation7 [shape = 'u8[65536]{0}', space=vmem, size = 0x10000, scoped, tag = 'input window, operand 3, single buffered']
    #allocation8 [shape = 'u8[32768]{0}', space=vmem, size = 0x8000, scoped, tag = 'input window, operand 5, single buffered']
    #allocation9 [shape = 's32[1]{0}', space=sflag, size = 0x4, scoped, tag = 'scoped memory for tpu_custom_call.1']
    #allocation10 [shape = 'u8[4096]{0}', space=vmem, size = 0x1000, scoped, tag = 'output window, operand 0, single buffered']
    %12 = vsyncpa [#allocation3], 0
    %13 = vsyncpa [#allocation6], 0
    %14 = vsyncpa [#allocation9], 0
    %15 = vsyncpa [#allocation4], 0
    // Predicated region
    $region2: #{tpu_custom_call.1} parent=1 // pred_check
      _
    $region3: #{tpu_custom_call.1} parent=1 // pred_check_branch
      %17 = sbr.rel (0) target = $region5
    $region4: #{tpu_custom_call.1} parent=1 // pred_region
      %s19 = ssub.s32 448, 112
      %20 = vsyncadd [#allocation3], %s19
      %s21 = sshll.u32 [#allocation2], 4
      %s22 = int_to_ptr.vmem [resolvable:$true] %s21
      %27 = dma.hbm_to_vmem [thread:$0]  %s0, 112, %s22, [#allocation3], 112, 112, 7
    $region5: #{tpu_custom_call.1} parent=1 // pred_fallthru
      _
    // Predicated region
    $region6: #{tpu_custom_call.1} parent=1 // pred_check
      _
    $region7: #{tpu_custom_call.1} parent=1 // pred_check_branch
      %29 = sbr.rel (0) target = $region9
    $region8: #{tpu_custom_call.1} parent=1 // pred_region
      %s31 = ssub.s32 12544, 12544
      %32 = vsyncadd [#allocation6], %s31
      %s33 = sshll.u32 [#allocation5], 4
      %s34 = int_to_ptr.vmem [resolvable:$true] %s33
      %39 = dma.hbm_to_vmem [thread:$0]  %s1, 12544, %s34, [#allocation6], 128, 128, 8
    $region9: #{tpu_custom_call.1} parent=1 // pred_fallthru
      _
    // Predicated region
    $region10: #{tpu_custom_call.1} parent=1 // pred_check
      _
    $region11: #{tpu_custom_call.1} parent=1 // pred_check_branch
      %41 = sbr.rel (0) target = $region13
    $region12: #{tpu_custom_call.1} parent=1 // pred_region
      _
    $region13: #{tpu_custom_call.1} parent=1 // pred_fallthru
      _
    // Predicated region
    $region14: #{tpu_custom_call.1} parent=1 // pred_check
      _
    $region15: #{tpu_custom_call.1} parent=1 // pred_check_branch
      %43 = sbr.rel (0) target = $region17
    $region16: #{tpu_custom_call.1} parent=1 // pred_region
      %s45 = ssub.s32 2048, 2048
      %46 = vsyncadd [#allocation6], %s45
      %s47 = sshll.u32 [#allocation7], 4
      %s48 = int_to_ptr.vmem [resolvable:$true] %s47
      %53 = dma.hbm_to_vmem [thread:$0]  %s3, 2048, %s48, [#allocation6], 64, 64, 4
    $region17: #{tpu_custom_call.1} parent=1 // pred_fallthru
      _
    // Predicated region
    $region18: #{tpu_custom_call.1} parent=1 // pred_check
      _
    $region19: #{tpu_custom_call.1} parent=1 // pred_check_branch
      %55 = sbr.rel (0) target = $region21
    $region20: #{tpu_custom_call.1} parent=1 // pred_region
      _
    $region21: #{tpu_custom_call.1} parent=1 // pred_fallthru
      _
    // Predicated region
    $region22: #{tpu_custom_call.1} parent=1 // pred_check
      _
    $region23: #{tpu_custom_call.1} parent=1 // pred_check_branch
      %57 = sbr.rel (0) target = $region25
    $region24: #{tpu_custom_call.1} parent=1 // pred_region
      %s59 = ssub.s32 1024, 1024
      %60 = vsyncadd [#allocation9], %s59
      %s61 = sshll.u32 [#allocation8], 4
      %s62 = int_to_ptr.vmem [resolvable:$true] %s61
      %67 = dma.hbm_to_vmem [thread:$0]  %s5, 1024, %s62, [#allocation9], 64, 64, 4
    $region25: #{tpu_custom_call.1} parent=1 // pred_fallthru
      _
    // Predicated region
    $region26: #{tpu_custom_call.1} parent=1 // pred_check
      _
    $region27: #{tpu_custom_call.1} parent=1 // pred_check_branch
      %69 = sbr.rel (0) target = $region29
    $region28: #{tpu_custom_call.1} parent=1 // pred_region
      _
    $region29: #{tpu_custom_call.1} parent=1 // pred_fallthru
      _
    // Predicated region
    $region30: #{tpu_custom_call.1} parent=1 // pred_check
      _
    $region31: #{tpu_custom_call.1} parent=1 // pred_check_branch
      %71 = sbr.rel (0) target = $region33
    $region32: #{tpu_custom_call.1} parent=1 // pred_region
      %72 = dma.done [#allocation3], 448
    $region33: #{tpu_custom_call.1} parent=1 // pred_fallthru
      _
    // Predicated region
    $region34: #{tpu_custom_call.1} parent=1 // pred_check
      _
    $region35: #{tpu_custom_call.1} parent=1 // pred_check_branch
      %74 = sbr.rel (0) target = $region37
    $region36: #{tpu_custom_call.1} parent=1 // pred_region
      %75 = dma.done [#allocation6], 12544
    $region37: #{tpu_custom_call.1} parent=1 // pred_fallthru
      _
    // Predicated region
    $region38: #{tpu_custom_call.1} parent=1 // pred_check
      _
    $region39: #{tpu_custom_call.1} parent=1 // pred_check_branch
      %77 = sbr.rel (0) target = $region41
    $region40: #{tpu_custom_call.1} parent=1 // pred_region
      %78 = dma.done [#allocation6], 2048
    $region41: #{tpu_custom_call.1} parent=1 // pred_fallthru
      _
    // Predicated region
    $region42: #{tpu_custom_call.1} parent=1 // pred_check
      _
    $region43: #{tpu_custom_call.1} parent=1 // pred_check_branch
      %80 = sbr.rel (0) target = $region45
    $region44: #{tpu_custom_call.1} parent=1 // pred_region
      %81 = dma.done [#allocation9], 1024
    $region45: #{tpu_custom_call.1} parent=1 // pred_fallthru
      _
    %v83 = vld [vmem:[#allocation2] sm:$0x7f]
    %v84 = vld [vmem:[#allocation2 + $0x7] sm:$0x7f]
    %v85 = vld [vmem:[#allocation2 + $0xe] sm:$0x7f]
    %v86 = vld [vmem:[#allocation2 + $0x15] sm:$0x7f]
    %v87 = vld [vmem:[#allocation5] sm:$0xff]
    %v88 = vld [vmem:[#allocation5 + $0x8] sm:$0xff]
    %v89 = vld [vmem:[#allocation5 + $0x10] sm:$0xff]
    %v90 = vld [vmem:[#allocation5 + $0x18] sm:$0xff]
    %v91 = vld [vmem:[#allocation5 + $0x20] sm:$0xff]
    %v92 = vld [vmem:[#allocation5 + $0x28] sm:$0xff]
    %v93 = vld [vmem:[#allocation5 + $0x30] sm:$0xff]
    %v94 = vld [vmem:[#allocation5 + $0x38] sm:$0xff]
    %v95 = vld [vmem:[#allocation5 + $0x40] sm:$0xff]
    %v96 = vld [vmem:[#allocation5 + $0x48] sm:$0xff]
    %v97 = vld [vmem:[#allocation5 + $0x50] sm:$0xff]
    %v98 = vld [vmem:[#allocation5 + $0x58] sm:$0xff]
    %v99 = vld [vmem:[#allocation5 + $0x60] sm:$0xff]
    %v100 = vld [vmem:[#allocation5 + $0x68] sm:$0xff]
    %v101 = vld [vmem:[#allocation5 + $0x70] sm:$0xff]
    %v102 = vld [vmem:[#allocation5 + $0x78] sm:$0xff]
    %v103 = vld [vmem:[#allocation5 + $0x80] sm:$0xff]
    %v104 = vld [vmem:[#allocation5 + $0x88] sm:$0xff]
    %v105 = vld [vmem:[#allocation5 + $0x90] sm:$0xff]
    %v106 = vld [vmem:[#allocation5 + $0x98] sm:$0xff]
    %v107 = vld [vmem:[#allocation5 + $0xa0] sm:$0xff]
    %v108 = vld [vmem:[#allocation5 + $0xa8] sm:$0xff]
    %v109 = vld [vmem:[#allocation5 + $0xb0] sm:$0xff]
    %v110 = vld [vmem:[#allocation5 + $0xb8] sm:$0xff]
    %v111 = vld [vmem:[#allocation5 + $0xc0] sm:$0xff]
    %v112 = vld [vmem:[#allocation5 + $0xc8] sm:$0xff]
    %v113 = vld [vmem:[#allocation5 + $0xd0] sm:$0xff]
    %v114 = vld [vmem:[#allocation5 + $0xd8] sm:$0xff]
    %v115 = vld [vmem:[#allocation5 + $0xe0] sm:$0xff]
    %v116 = vld [vmem:[#allocation5 + $0xe8] sm:$0xff]
    %v117 = vld [vmem:[#allocation5 + $0xf0] sm:$0xff]
    %v118 = vld [vmem:[#allocation5 + $0xf8] sm:$0xff]
    %v119 = vld [vmem:[#allocation5 + $0x100] sm:$0xff]
    %v120 = vld [vmem:[#allocation5 + $0x108] sm:$0xff]
    %v121 = vld [vmem:[#allocation5 + $0x110] sm:$0xff]
    %v122 = vld [vmem:[#allocation5 + $0x118] sm:$0xff]
    %v123 = vld [vmem:[#allocation5 + $0x120] sm:$0xff]
    %v124 = vld [vmem:[#allocation5 + $0x128] sm:$0xff]
    %v125 = vld [vmem:[#allocation5 + $0x130] sm:$0xff]
    %v126 = vld [vmem:[#allocation5 + $0x138] sm:$0xff]
    %v127 = vld [vmem:[#allocation5 + $0x140] sm:$0xff]
    %v128 = vld [vmem:[#allocation5 + $0x148] sm:$0xff]
    %v129 = vld [vmem:[#allocation5 + $0x150] sm:$0xff]
    %v130 = vld [vmem:[#allocation5 + $0x158] sm:$0xff]
    %v131 = vld [vmem:[#allocation5 + $0x160] sm:$0xff]
    %v132 = vld [vmem:[#allocation5 + $0x168] sm:$0xff]
    %v133 = vld [vmem:[#allocation5 + $0x170] sm:$0xff]
    %v134 = vld [vmem:[#allocation5 + $0x178] sm:$0xff]
    %v135 = vld [vmem:[#allocation5 + $0x180] sm:$0xff]
    %v136 = vld [vmem:[#allocation5 + $0x188] sm:$0xff]
    %v137 = vld [vmem:[#allocation5 + $0x190] sm:$0xff]
    %v138 = vld [vmem:[#allocation5 + $0x198] sm:$0xff]
    %v139 = vld [vmem:[#allocation5 + $0x1a0] sm:$0xff]
    %v140 = vld [vmem:[#allocation5 + $0x1a8] sm:$0xff]
    %v141 = vld [vmem:[#allocation5 + $0x1b0] sm:$0xff]
    %v142 = vld [vmem:[#allocation5 + $0x1b8] sm:$0xff]
    %v143 = vld [vmem:[#allocation5 + $0x1c0] sm:$0xff]
    %v144 = vld [vmem:[#allocation5 + $0x1c8] sm:$0xff]
    %v145 = vld [vmem:[#allocation5 + $0x1d0] sm:$0xff]
    %v146 = vld [vmem:[#allocation5 + $0x1d8] sm:$0xff]
    %v147 = vld [vmem:[#allocation5 + $0x1e0] sm:$0xff]
    %v148 = vld [vmem:[#allocation5 + $0x1e8] sm:$0xff]
    %v149 = vld [vmem:[#allocation5 + $0x1f0] sm:$0xff]
    %v150 = vld [vmem:[#allocation5 + $0x1f8] sm:$0xff]
    %v151 = vld [vmem:[#allocation5 + $0x200] sm:$0xff]
    %v152 = vld [vmem:[#allocation5 + $0x208] sm:$0xff]
    %v153 = vld [vmem:[#allocation5 + $0x210] sm:$0xff]
    %v154 = vld [vmem:[#allocation5 + $0x218] sm:$0xff]
    %v155 = vld [vmem:[#allocation5 + $0x220] sm:$0xff]
    %v156 = vld [vmem:[#allocation5 + $0x228] sm:$0xff]
    %v157 = vld [vmem:[#allocation5 + $0x230] sm:$0xff]
    %v158 = vld [vmem:[#allocation5 + $0x238] sm:$0xff]
    %v159 = vld [vmem:[#allocation5 + $0x240] sm:$0xff]
    %v160 = vld [vmem:[#allocation5 + $0x248] sm:$0xff]
    %v161 = vld [vmem:[#allocation5 + $0x250] sm:$0xff]
    %v162 = vld [vmem:[#allocation5 + $0x258] sm:$0xff]
    %v163 = vld [vmem:[#allocation5 + $0x260] sm:$0xff]
    %v164 = vld [vmem:[#allocation5 + $0x268] sm:$0xff]
    %v165 = vld [vmem:[#allocation5 + $0x270] sm:$0xff]
    %v166 = vld [vmem:[#allocation5 + $0x278] sm:$0xff]
    %v167 = vld [vmem:[#allocation5 + $0x280] sm:$0xff]
    %v168 = vld [vmem:[#allocation5 + $0x288] sm:$0xff]
    %v169 = vld [vmem:[#allocation5 + $0x290] sm:$0xff]
    %v170 = vld [vmem:[#allocation5 + $0x298] sm:$0xff]
    %v171 = vld [vmem:[#allocation5 + $0x2a0] sm:$0xff]
    %v172 = vld [vmem:[#allocation5 + $0x2a8] sm:$0xff]
    %v173 = vld [vmem:[#allocation5 + $0x2b0] sm:$0xff]
    %v174 = vld [vmem:[#allocation5 + $0x2b8] sm:$0xff]
    %v175 = vld [vmem:[#allocation5 + $0x2c0] sm:$0xff]
    %v176 = vld [vmem:[#allocation5 + $0x2c8] sm:$0xff]
    %v177 = vld [vmem:[#allocation5 + $0x2d0] sm:$0xff]
    %v178 = vld [vmem:[#allocation5 + $0x2d8] sm:$0xff]
    %v179 = vld [vmem:[#allocation5 + $0x2e0] sm:$0xff]
    %v180 = vld [vmem:[#allocation5 + $0x2e8] sm:$0xff]
    %v181 = vld [vmem:[#allocation5 + $0x2f0] sm:$0xff]
    %v182 = vld [vmem:[#allocation5 + $0x2f8] sm:$0xff]
    %v183 = vld [vmem:[#allocation5 + $0x300] sm:$0xff]
    %v184 = vld [vmem:[#allocation5 + $0x308] sm:$0xff]
    %v185 = vld [vmem:[%s2] sm:$0x3]
    %v187 = vlaneseq
    %v188 = vshrl.u32 %v187, 7
    %v189 = vsub.s32 0, %v188
    %v190 = vrot.slane %v185, %v189
    %v191 = vlaneseq
    %v192 = vshrl.u32 %v191, 7
    %v193 = vsub.s32 1, %v192
    %v194 = vrot.slane %v185, %v193
    %v201 = vcombine.low %v83, %v84
    %v202 = vcombine.high %v83, %v84
    %v203 = vcombine.low %v85, %v86
    %v204 = vcombine.high %v85, %v86
    %v206 = vunpack.c.l.s4 1966171168
    %v207 = vunpack.c.0.s8 %v206
    %v208 = vlaneseq
    %v209 = vshrl.u32 %v208, 7
    %v210 = vsub.s32 %v207, %v209
    %v211 = vrot.slane %v201, %v210
    %v213 = vunpack.c.l.s4 1966171168
    %v214 = vunpack.c.0.s8 %v213
    %v215 = vlaneseq
    %v216 = vshrl.u32 %v215, 7
    %v217 = vsub.s32 %v214, %v216
    %v218 = vrot.slane %v202, %v217
    %v220 = vunpack.c.l.s4 1966171168
    %v221 = vunpack.c.0.s8 %v220
    %v222 = vlaneseq
    %v223 = vshrl.u32 %v222, 7
    %v224 = vsub.s32 %v221, %v223
    %v225 = vrot.slane %v203, %v224
    %v227 = vunpack.c.l.s4 1966171168
    %v228 = vunpack.c.0.s8 %v227
    %v229 = vlaneseq
    %v230 = vshrl.u32 %v229, 7
    %v231 = vsub.s32 %v228, %v230
    %v232 = vrot.slane %v204, %v231
    %v233 = vcombine.low %v211, %v225
    %v234 = vcombine.high %v211, %v225
    %v235 = vcombine.low %v218, %v232
    %v236 = vcombine.high %v218, %v232
    %v238 = vunpack.c.l.s4 1966171168
    %v239 = vunpack.c.0.s8 %v238
    %v240 = vlaneseq
    %v241 = vshrl.u32 %v240, 7
    %v242 = vsub.s32 %v239, %v241
    %v243 = vrot.slane %v233, %v242
    %v245 = vunpack.c.l.s4 1966171168
    %v246 = vunpack.c.0.s8 %v245
    %v247 = vlaneseq
    %v248 = vshrl.u32 %v247, 7
    %v249 = vsub.s32 %v246, %v248
    %v250 = vrot.slane %v235, %v249
    %v252 = vunpack.c.l.s4 1966171168
    %v253 = vunpack.c.0.s8 %v252
    %v254 = vlaneseq
    %v255 = vshrl.u32 %v254, 7
    %v256 = vsub.s32 %v253, %v255
    %v257 = vrot.slane %v234, %v256
    %v259 = vunpack.c.l.s4 1966171168
    %v260 = vunpack.c.0.s8 %v259
    %v261 = vlaneseq
    %v262 = vshrl.u32 %v261, 7
    %v263 = vsub.s32 %v260, %v262
    %v264 = vrot.slane %v236, %v263
    %v265 = vcombine.high %v243, %v243
    %v266 = vcombine.high %v250, %v250
    %v267 = vcombine.high %v257, %v257
    %v372 = vunpack.c.l.b16 %v87
    %v373 = vunpack.c.h.b16 %v87
    %v374 = vunpack.c.l.b16 %v88
    %v375 = vunpack.c.h.b16 %v88
    %v376 = vunpack.c.l.b16 %v89
    %v377 = vunpack.c.h.b16 %v89
    %v378 = vunpack.c.l.b16 %v90
    %v379 = vunpack.c.h.b16 %v90
    %v380 = vunpack.c.l.b16 %v91
    %v381 = vunpack.c.h.b16 %v91
    %v382 = vunpack.c.l.b16 %v92
    %v383 = vunpack.c.h.b16 %v92
    %v384 = vunpack.c.l.b16 %v93
    %v385 = vunpack.c.h.b16 %v93
    %v386 = vunpack.c.l.b16 %v94
    %v387 = vunpack.c.h.b16 %v94
    %v388 = vunpack.c.l.b16 %v95
    %v389 = vunpack.c.h.b16 %v95
    %v390 = vunpack.c.l.b16 %v96
    %v391 = vunpack.c.h.b16 %v96
    %v392 = vunpack.c.l.b16 %v97
    %v393 = vunpack.c.h.b16 %v97
    %v394 = vunpack.c.l.b16 %v98
    %v395 = vunpack.c.h.b16 %v98
    %v396 = vunpack.c.l.b16 %v99
    %v397 = vunpack.c.h.b16 %v99
    %v398 = vunpack.c.l.b16 %v100
    %v399 = vunpack.c.h.b16 %v100
    %v400 = vunpack.c.l.b16 %v101
    %v401 = vunpack.c.h.b16 %v101
    %v402 = vunpack.c.l.b16 %v102
    %v403 = vunpack.c.h.b16 %v102
    %v404 = vunpack.c.l.b16 %v103
    %v405 = vunpack.c.h.b16 %v103
    %v406 = vunpack.c.l.b16 %v104
    %v407 = vunpack.c.h.b16 %v104
    %v408 = vunpack.c.l.b16 %v105
    %v409 = vunpack.c.h.b16 %v105
    %v410 = vunpack.c.l.b16 %v106
    %v411 = vunpack.c.h.b16 %v106
    %v412 = vunpack.c.l.b16 %v107
    %v413 = vunpack.c.h.b16 %v107
    %v414 = vunpack.c.l.b16 %v108
    %v415 = vunpack.c.h.b16 %v108
    %v416 = vunpack.c.l.b16 %v109
    %v417 = vunpack.c.h.b16 %v109
    %v418 = vunpack.c.l.b16 %v110
    %v419 = vunpack.c.h.b16 %v110
    %v420 = vunpack.c.l.b16 %v111
    %v421 = vunpack.c.h.b16 %v111
    %v422 = vunpack.c.l.b16 %v112
    %v423 = vunpack.c.h.b16 %v112
    %v424 = vunpack.c.l.b16 %v113
    %v425 = vunpack.c.h.b16 %v113
    %v426 = vunpack.c.l.b16 %v114
    %v427 = vunpack.c.h.b16 %v114
    %v428 = vunpack.c.l.b16 %v115
    %v429 = vunpack.c.h.b16 %v115
    %v430 = vunpack.c.l.b16 %v116
    %v431 = vunpack.c.h.b16 %v116
    %v432 = vunpack.c.l.b16 %v117
    %v433 = vunpack.c.h.b16 %v117
    %v434 = vunpack.c.l.b16 %v118
    %v435 = vunpack.c.h.b16 %v118
    %v436 = vunpack.c.l.b16 %v119
    %v437 = vunpack.c.h.b16 %v119
    %v438 = vunpack.c.l.b16 %v120
    %v439 = vunpack.c.h.b16 %v120
    %v440 = vunpack.c.l.b16 %v121
    %v441 = vunpack.c.h.b16 %v121
    %v442 = vunpack.c.l.b16 %v122
    %v443 = vunpack.c.h.b16 %v122
    %v444 = vunpack.c.l.b16 %v123
    %v445 = vunpack.c.h.b16 %v123
    %v446 = vunpack.c.l.b16 %v124
    %v447 = vunpack.c.h.b16 %v124
    %v448 = vunpack.c.l.b16 %v125
    %v449 = vunpack.c.h.b16 %v125
    %v450 = vunpack.c.l.b16 %v126
    %v451 = vunpack.c.h.b16 %v126
    %v452 = vunpack.c.l.b16 %v127
    %v453 = vunpack.c.h.b16 %v127
    %v454 = vunpack.c.l.b16 %v128
    %v455 = vunpack.c.h.b16 %v128
    %v456 = vunpack.c.l.b16 %v129
    %v457 = vunpack.c.h.b16 %v129
    %v458 = vunpack.c.l.b16 %v130
    %v459 = vunpack.c.h.b16 %v130
    %v460 = vunpack.c.l.b16 %v131
    %v461 = vunpack.c.h.b16 %v131
    %v462 = vunpack.c.l.b16 %v132
    %v463 = vunpack.c.h.b16 %v132
    %v464 = vunpack.c.l.b16 %v133
    %v465 = vunpack.c.h.b16 %v133
    %v466 = vunpack.c.l.b16 %v134
    %v467 = vunpack.c.h.b16 %v134
    %v468 = vunpack.c.l.b16 %v135
    %v469 = vunpack.c.h.b16 %v135
    %v470 = vunpack.c.l.b16 %v136
    %v471 = vunpack.c.h.b16 %v136
    %v472 = vunpack.c.l.b16 %v137
    %v473 = vunpack.c.h.b16 %v137
    %v474 = vunpack.c.l.b16 %v138
    %v475 = vunpack.c.h.b16 %v138
    %v476 = vunpack.c.l.b16 %v139
    %v477 = vunpack.c.h.b16 %v139
    %v478 = vunpack.c.l.b16 %v140
    %v479 = vunpack.c.h.b16 %v140
    %v480 = vunpack.c.l.b16 %v141
    %v481 = vunpack.c.h.b16 %v141
    %v482 = vunpack.c.l.b16 %v142
    %v483 = vunpack.c.h.b16 %v142
    %v484 = vunpack.c.l.b16 %v143
    %v485 = vunpack.c.h.b16 %v143
    %v486 = vunpack.c.l.b16 %v144
    %v487 = vunpack.c.h.b16 %v144
    %v488 = vunpack.c.l.b16 %v145
    %v489 = vunpack.c.h.b16 %v145
    %v490 = vunpack.c.l.b16 %v146
    %v491 = vunpack.c.h.b16 %v146
    %v492 = vunpack.c.l.b16 %v147
    %v493 = vunpack.c.h.b16 %v147
    %v494 = vunpack.c.l.b16 %v148
    %v495 = vunpack.c.h.b16 %v148
    %v496 = vunpack.c.l.b16 %v149
    %v497 = vunpack.c.h.b16 %v149
    %v498 = vunpack.c.l.b16 %v150
    %v499 = vunpack.c.h.b16 %v150
    %v500 = vunpack.c.l.b16 %v151
    %v501 = vunpack.c.h.b16 %v151
    %v502 = vunpack.c.l.b16 %v152
    %v503 = vunpack.c.h.b16 %v152
    %v504 = vunpack.c.l.b16 %v153
    %v505 = vunpack.c.h.b16 %v153
    %v506 = vunpack.c.l.b16 %v154
    %v507 = vunpack.c.h.b16 %v154
    %v508 = vunpack.c.l.b16 %v155
    %v509 = vunpack.c.h.b16 %v155
    %v510 = vunpack.c.l.b16 %v156
    %v511 = vunpack.c.h.b16 %v156
    %v512 = vunpack.c.l.b16 %v157
    %v513 = vunpack.c.h.b16 %v157
    %v514 = vunpack.c.l.b16 %v158
    %v515 = vunpack.c.h.b16 %v158
    %v516 = vunpack.c.l.b16 %v159
    %v517 = vunpack.c.h.b16 %v159
    %v518 = vunpack.c.l.b16 %v160
    %v519 = vunpack.c.h.b16 %v160
    %v520 = vunpack.c.l.b16 %v161
    %v521 = vunpack.c.h.b16 %v161
    %v522 = vunpack.c.l.b16 %v162
    %v523 = vunpack.c.h.b16 %v162
    %v524 = vunpack.c.l.b16 %v163
    %v525 = vunpack.c.h.b16 %v163
    %v526 = vunpack.c.l.b16 %v164
    %v527 = vunpack.c.h.b16 %v164
    %v528 = vunpack.c.l.b16 %v165
    %v529 = vunpack.c.h.b16 %v165
    %v530 = vunpack.c.l.b16 %v166
    %v531 = vunpack.c.h.b16 %v166
    %v532 = vunpack.c.l.b16 %v167
    %v533 = vunpack.c.h.b16 %v167
    %v534 = vunpack.c.l.b16 %v168
    %v535 = vunpack.c.h.b16 %v168
    %v536 = vunpack.c.l.b16 %v169
    %v537 = vunpack.c.h.b16 %v169
    %v538 = vunpack.c.l.b16 %v170
    %v539 = vunpack.c.h.b16 %v170
    %v540 = vunpack.c.l.b16 %v171
    %v541 = vunpack.c.h.b16 %v171
    %v542 = vunpack.c.l.b16 %v172
    %v543 = vunpack.c.h.b16 %v172
    %v544 = vunpack.c.l.b16 %v173
    %v545 = vunpack.c.h.b16 %v173
    %v546 = vunpack.c.l.b16 %v174
    %v547 = vunpack.c.h.b16 %v174
    %v548 = vunpack.c.l.b16 %v175
    %v549 = vunpack.c.h.b16 %v175
    %v550 = vunpack.c.l.b16 %v176
    %v551 = vunpack.c.h.b16 %v176
    %v552 = vunpack.c.l.b16 %v177
    %v553 = vunpack.c.h.b16 %v177
    %v554 = vunpack.c.l.b16 %v178
    %v555 = vunpack.c.h.b16 %v178
    %v556 = vunpack.c.l.b16 %v179
    %v557 = vunpack.c.h.b16 %v179
    %v558 = vunpack.c.l.b16 %v180
    %v559 = vunpack.c.h.b16 %v180
    %v560 = vunpack.c.l.b16 %v181
    %v561 = vunpack.c.h.b16 %v181
    %v562 = vunpack.c.l.b16 %v182
    %v563 = vunpack.c.h.b16 %v182
    %v564 = vunpack.c.l.b16 %v183
    %v565 = vunpack.c.h.b16 %v183
    %v566 = vunpack.c.l.b16 %v184
    %v567 = vunpack.c.h.b16 %v184
    %v568 = vpack.c.b16 %v374, %v372
    %v569 = vpack.c.b16 %v375, %v373
    %v570 = vpack.c.b16 %v378, %v376
    %v571 = vpack.c.b16 %v379, %v377
    %v572 = vpack.c.b16 %v382, %v380
    %v573 = vpack.c.b16 %v383, %v381
    %v574 = vpack.c.b16 %v386, %v384
    %v575 = vpack.c.b16 %v387, %v385
    %v576 = vpack.c.b16 %v390, %v388
    %v577 = vpack.c.b16 %v391, %v389
    %v578 = vpack.c.b16 %v394, %v392
    %v579 = vpack.c.b16 %v395, %v393
    %v580 = vpack.c.b16 %v398, %v396
    %v581 = vpack.c.b16 %v399, %v397
    %v582 = vpack.c.b16 %v402, %v400
    %v583 = vpack.c.b16 %v403, %v401
    %v584 = vpack.c.b16 %v406, %v404
    %v585 = vpack.c.b16 %v407, %v405
    %v586 = vpack.c.b16 %v410, %v408
    %v587 = vpack.c.b16 %v411, %v409
    %v588 = vpack.c.b16 %v414, %v412
    %v589 = vpack.c.b16 %v415, %v413
    %v590 = vpack.c.b16 %v418, %v416
    %v591 = vpack.c.b16 %v419, %v417
    %v592 = vpack.c.b16 %v422, %v420
    %v593 = vpack.c.b16 %v423, %v421
    %v594 = vpack.c.b16 %v426, %v424
    %v595 = vpack.c.b16 %v427, %v425
    %v596 = vpack.c.b16 %v430, %v428
    %v597 = vpack.c.b16 %v431, %v429
    %v598 = vpack.c.b16 %v434, %v432
    %v599 = vpack.c.b16 %v435, %v433
    %v600 = vpack.c.b16 %v438, %v436
    %v601 = vpack.c.b16 %v439, %v437
    %v602 = vpack.c.b16 %v442, %v440
    %v603 = vpack.c.b16 %v443, %v441
    %v604 = vpack.c.b16 %v446, %v444
    %v605 = vpack.c.b16 %v447, %v445
    %v606 = vpack.c.b16 %v450, %v448
    %v607 = vpack.c.b16 %v451, %v449
    %v608 = vpack.c.b16 %v454, %v452
    %v609 = vpack.c.b16 %v455, %v453
    %v610 = vpack.c.b16 %v458, %v456
    %v611 = vpack.c.b16 %v459, %v457
    %v612 = vpack.c.b16 %v462, %v460
    %v613 = vpack.c.b16 %v463, %v461
    %v614 = vpack.c.b16 %v466, %v464
    %v615 = vpack.c.b16 %v467, %v465
    %v616 = vpack.c.b16 %v470, %v468
    %v617 = vpack.c.b16 %v471, %v469
    %v618 = vpack.c.b16 %v474, %v472
    %v619 = vpack.c.b16 %v475, %v473
    %v620 = vpack.c.b16 %v478, %v476
    %v621 = vpack.c.b16 %v479, %v477
    %v622 = vpack.c.b16 %v482, %v480
    %v623 = vpack.c.b16 %v483, %v481
    %v624 = vpack.c.b16 %v486, %v484
    %v625 = vpack.c.b16 %v487, %v485
    %v626 = vpack.c.b16 %v490, %v488
    %v627 = vpack.c.b16 %v491, %v489
    %v628 = vpack.c.b16 %v494, %v492
    %v629 = vpack.c.b16 %v495, %v493
    %v630 = vpack.c.b16 %v498, %v496
    %v631 = vpack.c.b16 %v499, %v497
    %v632 = vpack.c.b16 %v502, %v500
    %v633 = vpack.c.b16 %v503, %v501
    %v634 = vpack.c.b16 %v506, %v504
    %v635 = vpack.c.b16 %v507, %v505
    %v636 = vpack.c.b16 %v510, %v508
    %v637 = vpack.c.b16 %v511, %v509
    %v638 = vpack.c.b16 %v514, %v512
    %v639 = vpack.c.b16 %v515, %v513
    %v640 = vpack.c.b16 %v518, %v516
    %v641 = vpack.c.b16 %v519, %v517
    %v642 = vpack.c.b16 %v522, %v520
    %v643 = vpack.c.b16 %v523, %v521
    %v644 = vpack.c.b16 %v526, %v524
    %v645 = vpack.c.b16 %v527, %v525
    %v646 = vpack.c.b16 %v530, %v528
    %v647 = vpack.c.b16 %v531, %v529
    %v648 = vpack.c.b16 %v534, %v532
    %v649 = vpack.c.b16 %v535, %v533
    %v650 = vpack.c.b16 %v538, %v536
    %v651 = vpack.c.b16 %v539, %v537
    %v652 = vpack.c.b16 %v542, %v540
    %v653 = vpack.c.b16 %v543, %v541
    %v654 = vpack.c.b16 %v546, %v544
    %v655 = vpack.c.b16 %v547, %v545
    %v656 = vpack.c.b16 %v550, %v548
    %v657 = vpack.c.b16 %v551, %v549
    %v658 = vpack.c.b16 %v554, %v552
    %v659 = vpack.c.b16 %v555, %v553
    %v660 = vpack.c.b16 %v558, %v556
    %v661 = vpack.c.b16 %v559, %v557
    %v662 = vpack.c.b16 %v562, %v560
    %v663 = vpack.c.b16 %v563, %v561
    %v664 = vpack.c.b16 %v566, %v564
    %v665 = vpack.c.b16 %v567, %v565
    %vm764 = vcmask 130048
    %v766 = vsel %vm764, %v266, 0
    %768 = vmatprep.subr.bf16.mxu0 %v569
    %769 = vmatpush1.bf16.msra.mxu0 %v568
    %770 = vmatprep.subr.bf16.mxu0 %v571
    %771 = vmatpush1.bf16.msra.mxu0 %v570
    %772 = vmatprep.subr.bf16.mxu0 %v573
    %773 = vmatpush1.bf16.msra.mxu0 %v572
    %774 = vmatprep.subr.bf16.mxu0 %v575
    %775 = vmatpush1.bf16.msra.mxu0 %v574
    %776 = vmatprep.subr.bf16.mxu0 %v577
    %777 = vmatpush1.bf16.msra.mxu0 %v576
    %778 = vmatprep.subr.bf16.mxu0 %v579
    %779 = vmatpush1.bf16.msra.mxu0 %v578
    %780 = vmatprep.subr.bf16.mxu0 %v581
    %781 = vmatpush1.bf16.msra.mxu0 %v580
    %782 = vmatprep.subr.bf16.mxu0 %v583
    %783 = vmatpush1.bf16.msra.mxu0 %v582
    %784 = vmatprep.subr.bf16.mxu0 %v585
    %785 = vmatpush1.bf16.msra.mxu0 %v584
    %786 = vmatprep.subr.bf16.mxu0 %v587
    %787 = vmatpush1.bf16.msra.mxu0 %v586
    %788 = vmatprep.subr.bf16.mxu0 %v589
    %789 = vmatpush1.bf16.msra.mxu0 %v588
    %790 = vmatprep.subr.bf16.mxu0 %v591
    %791 = vmatpush1.bf16.msra.mxu0 %v590
    %792 = vmatprep.subr.bf16.mxu0 %v593
    %793 = vmatpush1.bf16.msra.mxu0 %v592
    %794 = vmatprep.subr.bf16.mxu0 %v595
    %795 = vmatpush1.bf16.msra.mxu0 %v594
    %796 = vmatprep.subr.bf16.mxu0 %v597
    %797 = vmatpush1.bf16.msra.mxu0 %v596
    %798 = vmatprep.subr.bf16.mxu0 %v599
    %799 = vmatpush1.bf16.msra.mxu0 %v598
    %800 = vmatprep.mubr.bf16.mxu0 %v257
    %801 = vmatmul.mubr.bf16.gmra.mrb[0].mxu0 %v243
    %v802 = vpop.f32.mrb[0].mxu0
    %v803 = vadd.f32 %v190, %v802
    %v804 = vpop.f32.mrb[0].mxu0
    %v805 = vadd.f32 %v194, %v804
    %v806 = vpop.f32.mrb[0].mxu0
    %v807 = vpop.f32.mrb[0].mxu0
    %808 = vdwg.mxu0
    %809 = vmatprep.subr.bf16.mxu0 %v601
    %810 = vmatpush1.bf16.msra.mxu0 %v600
    %811 = vmatprep.subr.bf16.mxu0 %v603
    %812 = vmatpush1.bf16.msra.mxu0 %v602
    %813 = vmatprep.subr.bf16.mxu0 %v605
    %814 = vmatpush1.bf16.msra.mxu0 %v604
    %815 = vmatprep.subr.bf16.mxu0 %v607
    %816 = vmatpush1.bf16.msra.mxu0 %v606
    %817 = vmatprep.subr.bf16.mxu0 %v609
    %818 = vmatpush1.bf16.msra.mxu0 %v608
    %819 = vmatprep.subr.bf16.mxu0 %v611
    %820 = vmatpush1.bf16.msra.mxu0 %v610
    %821 = vmatprep.subr.bf16.mxu0 %v613
    %822 = vmatpush1.bf16.msra.mxu0 %v612
    %823 = vmatprep.subr.bf16.mxu0 %v615
    %824 = vmatpush1.bf16.msra.mxu0 %v614
    %825 = vmatprep.subr.bf16.mxu0 %v617
    %826 = vmatpush1.bf16.msra.mxu0 %v616
    %827 = vmatprep.subr.bf16.mxu0 %v619
    %828 = vmatpush1.bf16.msra.mxu0 %v618
    %829 = vmatprep.subr.bf16.mxu0 %v621
    %830 = vmatpush1.bf16.msra.mxu0 %v620
    %831 = vmatprep.subr.bf16.mxu0 %v623
    %832 = vmatpush1.bf16.msra.mxu0 %v622
    %833 = vmatprep.subr.bf16.mxu0 %v625
    %834 = vmatpush1.bf16.msra.mxu0 %v624
    %835 = vmatprep.subr.bf16.mxu0 %v627
    %836 = vmatpush1.bf16.msra.mxu0 %v626
    %837 = vmatprep.subr.bf16.mxu0 %v629
    %838 = vmatpush1.bf16.msra.mxu0 %v628
    %839 = vmatprep.subr.bf16.mxu0 %v631
    %840 = vmatpush1.bf16.msra.mxu0 %v630
    %841 = vmatprep.mubr.bf16.mxu0 %v267
    %842 = vmatmul.mubr.bf16.gmra.mrb[0].mxu0 %v265
    %v843 = vpop.f32.mrb[0].mxu0
    %v844 = vadd.f32 %v803, %v843
    %v845 = vpop.f32.mrb[0].mxu0
    %v846 = vadd.f32 %v805, %v845
    %v847 = vpop.f32.mrb[0].mxu0
    %v848 = vpop.f32.mrb[0].mxu0
    %849 = vdwg.mxu0
    %850 = vmatprep.subr.bf16.mxu0 %v633
    %851 = vmatpush1.bf16.msra.mxu0 %v632
    %852 = vmatprep.subr.bf16.mxu0 %v635
    %853 = vmatpush1.bf16.msra.mxu0 %v634
    %854 = vmatprep.subr.bf16.mxu0 %v637
    %855 = vmatpush1.bf16.msra.mxu0 %v636
    %856 = vmatprep.subr.bf16.mxu0 %v639
    %857 = vmatpush1.bf16.msra.mxu0 %v638
    %858 = vmatprep.subr.bf16.mxu0 %v641
    %859 = vmatpush1.bf16.msra.mxu0 %v640
    %860 = vmatprep.subr.bf16.mxu0 %v643
    %861 = vmatpush1.bf16.msra.mxu0 %v642
    %862 = vmatprep.subr.bf16.mxu0 %v645
    %863 = vmatpush1.bf16.msra.mxu0 %v644
    %864 = vmatprep.subr.bf16.mxu0 %v647
    %865 = vmatpush1.bf16.msra.mxu0 %v646
    %866 = vmatprep.subr.bf16.mxu0 %v649
    %867 = vmatpush1.bf16.msra.mxu0 %v648
    %868 = vmatprep.subr.bf16.mxu0 %v651
    %869 = vmatpush1.bf16.msra.mxu0 %v650
    %870 = vmatprep.subr.bf16.mxu0 %v653
    %871 = vmatpush1.bf16.msra.mxu0 %v652
    %872 = vmatprep.subr.bf16.mxu0 %v655
    %873 = vmatpush1.bf16.msra.mxu0 %v654
    %874 = vmatprep.subr.bf16.mxu0 %v657
    %875 = vmatpush1.bf16.msra.mxu0 %v656
    %876 = vmatprep.subr.bf16.mxu0 %v659
    %877 = vmatpush1.bf16.msra.mxu0 %v658
    %878 = vmatprep.subr.bf16.mxu0 %v661
    %879 = vmatpush1.bf16.msra.mxu0 %v660
    %880 = vmatprep.subr.bf16.mxu0 %v663
    %881 = vmatpush1.bf16.msra.mxu0 %v662
    %882 = vmatprep.mubr.bf16.mxu0 %v264
    %883 = vmatmul.mubr.bf16.gmra.mrb[0].mxu0 %v250
    %v884 = vpop.f32.mrb[0].mxu0
    %v885 = vadd.f32 %v844, %v884
    %v886 = vpop.f32.mrb[0].mxu0
    %v887 = vadd.f32 %v846, %v886
    %v888 = vpop.f32.mrb[0].mxu0
    %v889 = vpop.f32.mrb[0].mxu0
    %890 = vdwg.mxu0
    %891 = vmatprep.subr.bf16.mxu0 %v665
    %892 = vmatpush1.bf16.msra.mxu0 %v664
    %893 = vmatprep.subr.bf16.mxu0 0
    %894 = vmatpush1.bf16.msra.mxu0 0
    %895 = vmatprep.subr.bf16.mxu0 0
    %896 = vmatpush1.bf16.msra.mxu0 0
    %897 = vmatprep.subr.bf16.mxu0 0
    %898 = vmatpush1.bf16.msra.mxu0 0
    %899 = vmatprep.subr.bf16.mxu0 0
    %900 = vmatpush1.bf16.msra.mxu0 0
    %901 = vmatprep.subr.bf16.mxu0 0
    %902 = vmatpush1.bf16.msra.mxu0 0
    %903 = vmatprep.subr.bf16.mxu0 0
    %904 = vmatpush1.bf16.msra.mxu0 0
    %905 = vmatprep.subr.bf16.mxu0 0
    %906 = vmatpush1.bf16.msra.mxu0 0
    %907 = vmatprep.subr.bf16.mxu0 0
    %908 = vmatpush1.bf16.msra.mxu0 0
    %909 = vmatprep.subr.bf16.mxu0 0
    %910 = vmatpush1.bf16.msra.mxu0 0
    %911 = vmatprep.subr.bf16.mxu0 0
    %912 = vmatpush1.bf16.msra.mxu0 0
    %913 = vmatprep.subr.bf16.mxu0 0
    %914 = vmatpush1.bf16.msra.mxu0 0
    %915 = vmatprep.subr.bf16.mxu0 0
    %916 = vmatpush1.bf16.msra.mxu0 0
    %917 = vmatprep.subr.bf16.mxu0 0
    %918 = vmatpush1.bf16.msra.mxu0 0
    %919 = vmatprep.subr.bf16.mxu0 0
    %920 = vmatpush1.bf16.msra.mxu0 0
    %921 = vmatprep.subr.bf16.mxu0 0
    %922 = vmatpush1.bf16.msra.mxu0 0
    %923 = vmatprep.mubr.bf16.mxu0 0
    %924 = vmatmul.mubr.bf16.gmra.mrb[0].mxu0 %v766
    %v925 = vpop.f32.mrb[0].mxu0
    %v926 = vadd.f32 %v885, %v925
    %v927 = vpop.f32.mrb[0].mxu0
    %v928 = vadd.f32 %v887, %v927
    %v929 = vpop.f32.mrb[0].mxu0
    %v930 = vpop.f32.mrb[0].mxu0
    %931 = vdwg.mxu0
    %v932 = vmul.f32 %v926, %v926
    %v933 = vmul.f32 %v928, %v928
    %v934 = vpack.c.bf16 %v932, %v932
    %v935 = vpack.c.bf16 %v933, %v933
    %v936 = vld [vmem:[#allocation7] sm:$0xf]
    %v937 = vld [vmem:[#allocation7 + $0x4] sm:$0xf]
    %v938 = vld [vmem:[#allocation7 + $0x8] sm:$0xf]
    %v939 = vld [vmem:[#allocation7 + $0xc] sm:$0xf]
    %v940 = vld [vmem:[#allocation7 + $0x10] sm:$0xf]
    %v941 = vld [vmem:[#allocation7 + $0x14] sm:$0xf]
    %v942 = vld [vmem:[#allocation7 + $0x18] sm:$0xf]
    %v943 = vld [vmem:[#allocation7 + $0x1c] sm:$0xf]
    %v944 = vld [vmem:[#allocation7 + $0x20] sm:$0xf]
    %v945 = vld [vmem:[#allocation7 + $0x24] sm:$0xf]
    %v946 = vld [vmem:[#allocation7 + $0x28] sm:$0xf]
    %v947 = vld [vmem:[#allocation7 + $0x2c] sm:$0xf]
    %v948 = vld [vmem:[#allocation7 + $0x30] sm:$0xf]
    %v949 = vld [vmem:[#allocation7 + $0x34] sm:$0xf]
    %v950 = vld [vmem:[#allocation7 + $0x38] sm:$0xf]
    %v951 = vld [vmem:[#allocation7 + $0x3c] sm:$0xf]
    %v952 = vld [vmem:[#allocation7 + $0x40] sm:$0xf]
    %v953 = vld [vmem:[#allocation7 + $0x44] sm:$0xf]
    %v954 = vld [vmem:[#allocation7 + $0x48] sm:$0xf]
    %v955 = vld [vmem:[#allocation7 + $0x4c] sm:$0xf]
    %v956 = vld [vmem:[#allocation7 + $0x50] sm:$0xf]
    %v957 = vld [vmem:[#allocation7 + $0x54] sm:$0xf]
    %v958 = vld [vmem:[#allocation7 + $0x58] sm:$0xf]
    %v959 = vld [vmem:[#allocation7 + $0x5c] sm:$0xf]
    %v960 = vld [vmem:[#allocation7 + $0x60] sm:$0xf]
    %v961 = vld [vmem:[#allocation7 + $0x64] sm:$0xf]
    %v962 = vld [vmem:[#allocation7 + $0x68] sm:$0xf]
    %v963 = vld [vmem:[#allocation7 + $0x6c] sm:$0xf]
    %v964 = vld [vmem:[#allocation7 + $0x70] sm:$0xf]
    %v965 = vld [vmem:[#allocation7 + $0x74] sm:$0xf]
    %v966 = vld [vmem:[#allocation7 + $0x78] sm:$0xf]
    %v967 = vld [vmem:[#allocation7 + $0x7c] sm:$0xf]
    %v968 = vld [vmem:[%s4] sm:$0x1]
    %v970 = vlaneseq
    %v971 = vshrl.u32 %v970, 7
    %v972 = vsub.s32 0, %v971
    %v973 = vrot.slane %v968, %v972
    %v1007 = vunpack.c.l.b16 %v936
    %v1008 = vunpack.c.l.b16 %v937
    %v1009 = vunpack.c.l.b16 %v938
    %v1010 = vunpack.c.l.b16 %v939
    %v1011 = vunpack.c.l.b16 %v940
    %v1012 = vunpack.c.l.b16 %v941
    %v1013 = vunpack.c.l.b16 %v942
    %v1014 = vunpack.c.l.b16 %v943
    %v1015 = vunpack.c.l.b16 %v944
    %v1016 = vunpack.c.l.b16 %v945
    %v1017 = vunpack.c.l.b16 %v946
    %v1018 = vunpack.c.l.b16 %v947
    %v1019 = vunpack.c.l.b16 %v948
    %v1020 = vunpack.c.l.b16 %v949
    %v1021 = vunpack.c.l.b16 %v950
    %v1022 = vunpack.c.l.b16 %v951
    %v1023 = vunpack.c.l.b16 %v952
    %v1024 = vunpack.c.l.b16 %v953
    %v1025 = vunpack.c.l.b16 %v954
    %v1026 = vunpack.c.l.b16 %v955
    %v1027 = vunpack.c.l.b16 %v956
    %v1028 = vunpack.c.l.b16 %v957
    %v1029 = vunpack.c.l.b16 %v958
    %v1030 = vunpack.c.l.b16 %v959
    %v1031 = vunpack.c.l.b16 %v960
    %v1032 = vunpack.c.l.b16 %v961
    %v1033 = vunpack.c.l.b16 %v962
    %v1034 = vunpack.c.l.b16 %v963
    %v1035 = vunpack.c.l.b16 %v964
    %v1036 = vunpack.c.l.b16 %v965
    %v1037 = vunpack.c.l.b16 %v966
    %v1038 = vunpack.c.l.b16 %v967
    %v1039 = vpack.c.b16 %v1008, %v1007
    %v1040 = vpack.c.b16 %v1010, %v1009
    %v1041 = vpack.c.b16 %v1012, %v1011
    %v1042 = vpack.c.b16 %v1014, %v1013
    %v1043 = vpack.c.b16 %v1016, %v1015
    %v1044 = vpack.c.b16 %v1018, %v1017
    %v1045 = vpack.c.b16 %v1020, %v1019
    %v1046 = vpack.c.b16 %v1022, %v1021
    %v1047 = vpack.c.b16 %v1024, %v1023
    %v1048 = vpack.c.b16 %v1026, %v1025
    %v1049 = vpack.c.b16 %v1028, %v1027
    %v1050 = vpack.c.b16 %v1030, %v1029
    %v1051 = vpack.c.b16 %v1032, %v1031
    %v1052 = vpack.c.b16 %v1034, %v1033
    %v1053 = vpack.c.b16 %v1036, %v1035
    %v1054 = vpack.c.b16 %v1038, %v1037
    %1071 = vmatprep.subr.bf16.mxu0 0
    %1072 = vmatpush1.bf16.msra.mxu0 %v1039
    %1073 = vmatprep.subr.bf16.mxu0 0
    %1074 = vmatpush1.bf16.msra.mxu0 %v1040
    %1075 = vmatprep.subr.bf16.mxu0 0
    %1076 = vmatpush1.bf16.msra.mxu0 %v1041
    %1077 = vmatprep.subr.bf16.mxu0 0
    %1078 = vmatpush1.bf16.msra.mxu0 %v1042
    %1079 = vmatprep.subr.bf16.mxu0 0
    %1080 = vmatpush1.bf16.msra.mxu0 %v1043
    %1081 = vmatprep.subr.bf16.mxu0 0
    %1082 = vmatpush1.bf16.msra.mxu0 %v1044
    %1083 = vmatprep.subr.bf16.mxu0 0
    %1084 = vmatpush1.bf16.msra.mxu0 %v1045
    %1085 = vmatprep.subr.bf16.mxu0 0
    %1086 = vmatpush1.bf16.msra.mxu0 %v1046
    %1087 = vmatprep.subr.bf16.mxu0 0
    %1088 = vmatpush1.bf16.msra.mxu0 %v1047
    %1089 = vmatprep.subr.bf16.mxu0 0
    %1090 = vmatpush1.bf16.msra.mxu0 %v1048
    %1091 = vmatprep.subr.bf16.mxu0 0
    %1092 = vmatpush1.bf16.msra.mxu0 %v1049
    %1093 = vmatprep.subr.bf16.mxu0 0
    %1094 = vmatpush1.bf16.msra.mxu0 %v1050
    %1095 = vmatprep.subr.bf16.mxu0 0
    %1096 = vmatpush1.bf16.msra.mxu0 %v1051
    %1097 = vmatprep.subr.bf16.mxu0 0
    %1098 = vmatpush1.bf16.msra.mxu0 %v1052
    %1099 = vmatprep.subr.bf16.mxu0 0
    %1100 = vmatpush1.bf16.msra.mxu0 %v1053
    %1101 = vmatprep.subr.bf16.mxu0 0
    %1102 = vmatpush1.bf16.msra.mxu0 %v1054
    %1103 = vmatprep.mubr.bf16.mxu0 %v935
    %1104 = vmatmul.mubr.bf16.gmra.mrb[0].mxu0 %v934
    %v1105 = vpop.f32.mrb[0].mxu0
    %v1106 = vadd.f32 %v973, %v1105
    %v1107 = vpop.f32.mrb[0].mxu0
    %v1108 = vpop.f32.mrb[0].mxu0
    %v1109 = vpop.f32.mrb[0].mxu0
    %1110 = vdwg.mxu0
    %v1111 = vmul.f32 %v1106, %v1106
    %v1112 = vpack.c.bf16 %v1111, %v1111
    %v1113 = vld [vmem:[#allocation8] sm:$0xf]
    %v1114 = vld [vmem:[#allocation8 + $0x4] sm:$0xf]
    %v1115 = vld [vmem:[#allocation8 + $0x8] sm:$0xf]
    %v1116 = vld [vmem:[#allocation8 + $0xc] sm:$0xf]
    %v1117 = vld [vmem:[#allocation8 + $0x10] sm:$0xf]
    %v1118 = vld [vmem:[#allocation8 + $0x14] sm:$0xf]
    %v1119 = vld [vmem:[#allocation8 + $0x18] sm:$0xf]
    %v1120 = vld [vmem:[#allocation8 + $0x1c] sm:$0xf]
    %v1121 = vld [vmem:[#allocation8 + $0x20] sm:$0xf]
    %v1122 = vld [vmem:[#allocation8 + $0x24] sm:$0xf]
    %v1123 = vld [vmem:[#allocation8 + $0x28] sm:$0xf]
    %v1124 = vld [vmem:[#allocation8 + $0x2c] sm:$0xf]
    %v1125 = vld [vmem:[#allocation8 + $0x30] sm:$0xf]
    %v1126 = vld [vmem:[#allocation8 + $0x34] sm:$0xf]
    %v1127 = vld [vmem:[#allocation8 + $0x38] sm:$0xf]
    %v1128 = vld [vmem:[#allocation8 + $0x3c] sm:$0xf]
    %v1129 = vld [vmem:[%s6] sm:$0x1]
    %v1131 = vlaneseq
    %v1132 = vshrl.u32 %v1131, 7
    %v1133 = vsub.s32 0, %v1132
    %v1134 = vrot.slane %v1129, %v1133
    %v1152 = vunpack.c.l.b16 %v1113
    %v1153 = vunpack.c.l.b16 %v1114
    %v1154 = vunpack.c.l.b16 %v1115
    %v1155 = vunpack.c.l.b16 %v1116
    %v1156 = vunpack.c.l.b16 %v1117
    %v1157 = vunpack.c.l.b16 %v1118
    %v1158 = vunpack.c.l.b16 %v1119
    %v1159 = vunpack.c.l.b16 %v1120
    %v1160 = vunpack.c.l.b16 %v1121
    %v1161 = vunpack.c.l.b16 %v1122
    %v1162 = vunpack.c.l.b16 %v1123
    %v1163 = vunpack.c.l.b16 %v1124
    %v1164 = vunpack.c.l.b16 %v1125
    %v1165 = vunpack.c.l.b16 %v1126
    %v1166 = vunpack.c.l.b16 %v1127
    %v1167 = vunpack.c.l.b16 %v1128
    %v1168 = vpack.c.b16 %v1153, %v1152
    %v1169 = vpack.c.b16 %v1155, %v1154
    %v1170 = vpack.c.b16 %v1157, %v1156
    %v1171 = vpack.c.b16 %v1159, %v1158
    %v1172 = vpack.c.b16 %v1161, %v1160
    %v1173 = vpack.c.b16 %v1163, %v1162
    %v1174 = vpack.c.b16 %v1165, %v1164
    %v1175 = vpack.c.b16 %v1167, %v1166
    %1184 = vmatprep.subr.bf16.mxu0 0
    %1185 = vmatpush1.bf16.msra.mxu0 %v1168
    %1186 = vmatprep.subr.bf16.mxu0 0
    %1187 = vmatpush1.bf16.msra.mxu0 %v1169
    %1188 = vmatprep.subr.bf16.mxu0 0
    %1189 = vmatpush1.bf16.msra.mxu0 %v1170
    %1190 = vmatprep.subr.bf16.mxu0 0
    %1191 = vmatpush1.bf16.msra.mxu0 %v1171
    %1192 = vmatprep.subr.bf16.mxu0 0
    %1193 = vmatpush1.bf16.msra.mxu0 %v1172
    %1194 = vmatprep.subr.bf16.mxu0 0
    %1195 = vmatpush1.bf16.msra.mxu0 %v1173
    %1196 = vmatprep.subr.bf16.mxu0 0
    %1197 = vmatpush1.bf16.msra.mxu0 %v1174
    %1198 = vmatprep.subr.bf16.mxu0 0
    %1199 = vmatpush1.bf16.msra.mxu0 %v1175
    %1200 = vmatprep.subr.bf16.mxu0 0
    %1201 = vmatpush1.bf16.msra.mxu0 0
    %1202 = vmatprep.subr.bf16.mxu0 0
    %1203 = vmatpush1.bf16.msra.mxu0 0
    %1204 = vmatprep.subr.bf16.mxu0 0
    %1205 = vmatpush1.bf16.msra.mxu0 0
    %1206 = vmatprep.subr.bf16.mxu0 0
    %1207 = vmatpush1.bf16.msra.mxu0 0
    %1208 = vmatprep.subr.bf16.mxu0 0
    %1209 = vmatpush1.bf16.msra.mxu0 0
    %1210 = vmatprep.subr.bf16.mxu0 0
    %1211 = vmatpush1.bf16.msra.mxu0 0
    %1212 = vmatprep.subr.bf16.mxu0 0
    %1213 = vmatpush1.bf16.msra.mxu0 0
    %1214 = vmatprep.subr.bf16.mxu0 0
    %1215 = vmatpush1.bf16.msra.mxu0 0
    %1216 = vmatprep.mubr.bf16.mxu0 0
    %1217 = vmatmul.mubr.bf16.gmra.mrb[0].mxu0 %v1112
    %v1218 = vpop.f32.mrb[0].mxu0
    %v1219 = vadd.f32 %v1134, %v1218
    %v1220 = vpop.f32.mrb[0].mxu0
    %v1221 = vpop.f32.mrb[0].mxu0
    %v1222 = vpop.f32.mrb[0].mxu0
    %1223 = vdwg.mxu0
    %1224 = vst [vmem:[#allocation10] sm:$0xff] %v1219
    // Predicated region
    $region46: #{tpu_custom_call.1} parent=1 // pred_check
      _
    $region47: #{tpu_custom_call.1} parent=1 // pred_check_branch
      %1226 = sbr.rel (0) target = $region49
    $region48: #{tpu_custom_call.1} parent=1 // pred_region
      %s1228 = ssub.s32 128, 128
      %1229 = vsyncadd [#allocation4], %s1228
      %s1231 = sshll.u32 [#allocation10], 4
      %s1232 = int_to_ptr.vmem [resolvable:$true] %s1231
      %1234 = dma.vmem_to_hbm [thread:$0]  %s1232, 128, %s7, [#allocation4]
    $region49: #{tpu_custom_call.1} parent=1 // pred_fallthru
      _
    // Predicated region
    $region50: #{tpu_custom_call.1} parent=1 // pred_check
      _
    $region51: #{tpu_custom_call.1} parent=1 // pred_check_branch
      %1236 = sbr.rel (0) target = $region53
    $region52: #{tpu_custom_call.1} parent=1 // pred_region
      %1237 = dma.done [#allocation4], 128
    $region53: #{tpu_custom_call.1} parent=1 // pred_fallthru
      _
    %1238 = vsyncpa [#allocation3], 1
    %1239 = vsyncpa [#allocation6], 1
    %1240 = vsyncpa [#allocation9], 1
    %1241 = vsyncpa [#allocation4], 1

</llo_original>
